<compile_context>
chip_gen: v7x
topology: tpu7x:2x2x1
jax: 0.10.0
libtpu: 0.0.40
codegen_flags: <defaults>
</compile_context>

<pallas_src>
import jax
import jax.numpy as jnp
from jax import lax
from jax.experimental import pallas as pl
from jax.experimental.pallas import tpu as pltpu


def _round_up(x, m):
    return (x + m - 1) // m * m


def _cdiv(a, b):
    return -(-a // b)


# --------------------------------------------------------------------------------------
# Pass 1: differencing + streaming statistics (per-tile partials, "parallel"-safe).
# --------------------------------------------------------------------------------------
def _diff_stats_kernel(shiftv_ref, xlead_ref, xlag_ref, difft_ref, sd_ref, stat_ref):
    xl = xlead_ref[...].astype(jnp.float32)
    xg = xlag_ref[...].astype(jnp.float32)
    sd = xl - xg * difft_ref[...]                       # (TB_s, L_pad) f32
    sd_ref[...] = sd.astype(jnp.bfloat16)               # hand-off to pass 2 (bf16)

    # Shifted sum-of-squares: shiftv is c on real columns, 0 on padded columns,
    # so column padding contributes exactly 0; row padding is corrected in the wrapper.
    d = sd - shiftv_ref[...]
    psum = jnp.sum(sd)
    psq = jnp.sum(d * d)

    rows = lax.broadcasted_iota(jnp.int32, (8, 128), 0)
    tile = jnp.where(rows == 0, psum, jnp.where(rows == 1, psq, jnp.float32(0.0)))
    stat_ref[...] = tile.reshape(1, 8, 128)


# --------------------------------------------------------------------------------------
# Pass 2: one wide MXU matmul per tile:  out = sd@W_ar + (sd@W_ma_eff)*inv_std + bias.
# --------------------------------------------------------------------------------------
def _arima_kernel(inv_ref, sd_ref, w_ref, bias_ref, out_ref):
    res = jnp.dot(sd_ref[...], w_ref[0], preferred_element_type=jnp.float32)
    tn = bias_ref.shape[-1]
    inv_std = inv_ref[0, 0]
    out = res[:, :tn] + res[:, tn:] * inv_std + bias_ref[...]
    out_ref[...] = out.astype(out_ref.dtype)


def arima_forward(batch_x, params, pred_len, *, max_block_b=256):
    """Pallas implementation of ARIMA.forward. Returns (B, pred_len, input_dim)."""
    B, S, D = batch_x.shape
    L = (S - 1) * D
    P = pred_len * D

    f32 = jnp.float32
    bf16 = jnp.bfloat16

    L_pad = _round_up(L, 128)
    P_pad = _round_up(P, 128)

    # ---- tiling ------------------------------------------------------------------
    # Pass-2 batch tile: >= 2 tiles whenever possible so the "parallel" batch axis can
    # split across the two v7x TensorCores; multiples of 16 (bf16 sublane packing).
    TB = _round_up(min(max_block_b, max(_cdiv(B, 2), 8)), 16)
    # Output-column tile: keep the (double-buffered) resident bf16 weight slab bounded.
    TN = P_pad
    while TN > 128 and 8 * L_pad * TN > (16 << 20):
        TN = _round_up(TN // 2, 128)
    # Keep double-buffered sd / out tiles bounded as well.
    while TB > 16 and (4 * TB * L_pad + 8 * TB * TN) > (12 << 20):
        TB = _round_up(TB // 2, 16)
    nb = _cdiv(B, TB)
    B_pad = nb * TB
    n_col = _cdiv(P_pad, TN)
    P_tot = n_col * TN

    # Pass-1 batch tile: pure streaming (no resident weights) -> merge tiles for fewer
    # grid steps, while keeping >= 2 tiles for v7x and the footprint bounded.
    k = 1
    for cand in (4, 2):
        if nb % cand == 0 and nb // cand >= 2:
            k = cand
            break
    while k > 1 and 12 * TB * k * L_pad > (24 << 20):
        k //= 2
    TB_s = TB * k
    nb_s = nb // k

    # ---- inputs (bf16 HBM stream; both passes are bandwidth-bound on this array) ---
    x = batch_x.astype(f32)
    x_lead = jnp.pad(x[:, 1:, :].reshape(B, L),
                     ((0, B_pad - B), (0, L_pad - L))).astype(bf16)
    x_lag = jnp.pad(x[:, :-1, :].reshape(B, L),
                    ((0, B_pad - B), (0, L_pad - L))).astype(bf16)
    diff_d = params["diff"][:D].astype(f32)
    difft = jnp.pad(jnp.tile(diff_d, S - 1), (0, L_pad - L)).reshape(1, L_pad)

    # Variance shift c (any value is exact algebraically; a near-mean value avoids
    # catastrophic cancellation of the one-pass formula for large-offset series).
    c = jnp.mean(x[0, 1:, :] - x[0, :-1, :] * diff_d[None, :]).astype(f32)
    shiftv = jnp.where(jnp.arange(L_pad) < L, c, jnp.float32(0.0)).reshape(1, L_pad)

    # ---- parameter prep: fold Conv1d into MA weights; concat AR|MA weight slab -----
    w_ar = params["w_ar"].astype(f32)               # (P, L)
    w_ma = params["w_ma"].astype(f32)               # (P, L)
    b_ar = params["b_ar"].astype(f32)               # (P,)
    b_ma = params["b_ma"].astype(f32)               # (P,)
    cw = params["conv_w"].reshape(-1).astype(f32)   # (K,)
    cb = params["conv_b"].reshape(()).astype(f32)   # scalar
    K = int(cw.shape[0])
    pad = (K - 1) // 2

    # wma_conv[p, m] = sum_k cw[k] * w_ma[p, m + pad - k]   (zero outside [0, L))
    w_ma_p = jnp.pad(w_ma, ((0, 0), (K - 1 - pad, pad)))
    wma_conv = jnp.zeros_like(w_ma)
    for kk in range(K):
        wma_conv = wma_conv + cw[kk] * w_ma_p[:, K - 1 - kk:K - 1 - kk + L]
    wma_eff = w_ma - wma_conv
    ma_const = cb * jnp.sum(w_ma, axis=1)           # (P,)

    def pad_wT(w):   # (P, L) -> (n_col, L_pad, TN) bf16 column tiles (lane-dense N)
        wt = jnp.pad(w.T, ((0, L_pad - L), (0, P_tot - P))).astype(bf16)
        return wt.reshape(L_pad, n_col, TN).transpose(1, 0, 2)

    w_slab = jnp.concatenate([pad_wT(w_ar), pad_wT(wma_eff)], axis=2)  # (n_col,L_pad,2TN)

    smem = pltpu.MemorySpace.SMEM

    # ---- pass 1: differencing + per-tile statistics partials ------------------------
    need1 = 12 * TB_s * L_pad + 16 * L_pad + (1 << 17)
    vmem1 = int(min(max(2 * need1, 4 << 20), 48 << 20))
    vmem1 = max(vmem1, need1 + (1 << 20))

    sd, stats = pl.pallas_call(
        _diff_stats_kernel,
        out_shape=(jax.ShapeDtypeStruct((B_pad, L_pad), bf16),
                   jax.ShapeDtypeStruct((nb_s, 8, 128), f32)),
        grid=(nb_s,),
        in_specs=[pl.BlockSpec((1, L_pad), lambda i: (0, 0)),
                  pl.BlockSpec((TB_s, L_pad), lambda i: (i, 0)),
                  pl.BlockSpec((TB_s, L_pad), lambda i: (i, 0)),
                  pl.BlockSpec((1, L_pad), lambda i: (0, 0))],
        out_specs=(pl.BlockSpec((TB_s, L_pad), lambda i: (i, 0)),
                   pl.BlockSpec((1, 8, 128), lambda i: (i, 0, 0))),
        compiler_params=pltpu.CompilerParams(
            dimension_semantics=("parallel",),
            vmem_limit_bytes=vmem1),
    )(shiftv, x_lead, x_lag, difft)

    # ---- finalize mean / unbiased std (tiny scalar XLA between the passes) ---------
    n_real = float(B * L)
    s1 = jnp.sum(stats[:, 0, 0])                                   # padding adds 0
    s2c = jnp.sum(stats[:, 1, 0]) - float((B_pad - B) * L) * c * c  # padded rows: (0-c)^2
    mean = s1 * (1.0 / n_real)
    var = (s2c - n_real * (mean - c) * (mean - c)) * (1.0 / (n_real - 1.0))
    inv_std = lax.rsqrt(jnp.maximum(var, jnp.float32(1e-12)))
    inv_arr = inv_std.reshape(1, 1).astype(f32)

    bias = (jnp.pad(b_ar + b_ma, (0, P_tot - P)) + mean
            - jnp.pad(ma_const, (0, P_tot - P)) * inv_std).reshape(1, P_tot)

    # ---- pass 2: AR + MA via one wide MXU matmul ------------------------------------
    need2 = 8 * L_pad * TN + 4 * TB * L_pad + 8 * TB * TN + 8 * TN + (1 << 18)
    vmem2 = int(min(max(need2 + need2 // 4 + (2 << 20), 8 << 20), 40 << 20))
    vmem2 = max(vmem2, need2 + (1 << 20))
    # TODO(synk): for extreme L where the slab is still over budget at TN=128, add a
    # third grid axis over the L reduction with an f32 VMEM accumulator.

    out = pl.pallas_call(
        _arima_kernel,
        out_shape=jax.ShapeDtypeStruct((B_pad, P_tot), f32),
        grid=(n_col, nb),   # column axis outer -> weight tile stays resident over batch
        in_specs=[pl.BlockSpec((1, 1), lambda c_, i: (0, 0), memory_space=smem),
                  pl.BlockSpec((TB, L_pad), lambda c_, i: (i, 0)),
                  pl.BlockSpec((1, L_pad, 2 * TN), lambda c_, i: (c_, 0, 0)),
                  pl.BlockSpec((1, TN), lambda c_, i: (0, c_))],
        out_specs=pl.BlockSpec((TB, TN), lambda c_, i: (i, c_)),
        compiler_params=pltpu.CompilerParams(
            dimension_semantics=("parallel", "parallel"),
            vmem_limit_bytes=vmem2),
    )(inv_arr, sd, w_slab, bias)

    return out[:B, :P].reshape(B, pred_len, D)


def arima_reference(batch_x, params, pred_len):
    """Pure-JAX f32 reference mirroring the PyTorch forward (correctness check)."""
    B, S, D = batch_x.shape
    diff = params["diff"][:D]
    sd = batch_x[:, 1:, :] - batch_x[:, :-1, :] * diff[None, None, :]
    x = sd.reshape(B, -1)
    ar = x @ params["w_ar"].T + params["b_ar"]

    cw = params["conv_w"].reshape(-1)
    K = cw.shape[0]
    pad = (K - 1) // 2
    xp = jnp.pad(x, ((0, 0), (pad, pad)))
    conv = params["conv_b"].reshape(())
    for k in range(K):
        conv = conv + cw[k] * xp[:, k:k + x.shape[1]]

    n = sd.size
    mean_all = jnp.mean(sd)
    std = jnp.sqrt(jnp.sum((sd - mean_all) ** 2) / (n - 1))   # torch.std (unbiased)
    res = (x - conv) / std
    ma = res @ params["w_ma"].T + params["b_ma"] + mean_all
    out = ar + ma
    return out.reshape(-1, pred_len, D)


if __name__ == "__main__":
    # Small shapes consistent with the module's shape contract.
    B, input_dim, seq_len, pred_len, kernel_size = 2, 4, 8, 4, 3
    L = (seq_len - 1) * input_dim        # 28
    P = pred_len * input_dim             # 16
    label_len = 2                        # unused by forward (as in PyTorch)

    key = jax.random.PRNGKey(0)
    ks = jax.random.split(key, 9)

    # Deterministic synthetic parameters (shapes per ARIMA.__init__).  The module
    # inits `diff` to zeros; use small random values so differencing is exercised.
    params = {
        "w_ar": jax.random.normal(ks[0], (P, L), jnp.float32) * 0.1,
        "b_ar": jax.random.normal(ks[1], (P,), jnp.float32) * 0.1,
        "w_ma": jax.random.normal(ks[2], (P, L), jnp.float32) * 0.1,
        "b_ma": jax.random.normal(ks[3], (P,), jnp.float32) * 0.1,
        "conv_w": jax.random.normal(ks[4], (1, 1, kernel_size), jnp.float32) * 0.5,
        "conv_b": jax.random.normal(ks[5], (1,), jnp.float32) * 0.1,
        "diff": jax.random.normal(ks[6], (P,), jnp.float32) * 0.1,
    }

    # Forward inputs (marks / dec_inp are unused by the forward, kept for fidelity).
    batch_x = jax.random.normal(ks[7], (B, seq_len, input_dim), jnp.float32)
    batch_x_mark = jnp.zeros((B, seq_len, 4), jnp.float32)
    dec_inp = jnp.zeros((B, label_len + pred_len, input_dim), jnp.float32)
    batch_y_mark = jnp.zeros((B, label_len + pred_len, 4), jnp.float32)

    fwd = jax.jit(arima_forward, static_argnums=2)
    out = fwd(batch_x, params, pred_len)
    out = jax.block_until_ready(out)

    ref = arima_reference(batch_x, params, pred_len)
    assert out.shape == (B, pred_len, input_dim), out.shape
    # Tolerance accounts for the bf16 HBM stream / bf16 MXU operands (f32 accumulation).
    assert jnp.allclose(out, ref, rtol=3e-2, atol=3e-2), (
        float(jnp.max(jnp.abs(out - ref))))

    print("KERNEL_OK")
</pallas_src>

<mosaic_0001>
module attributes {stable_mosaic.version = 11 : i64} {
  func.func @_diff_stats_kernel(%arg0: i32, %arg1: memref<1x128xf32, #tpu.memory_space<vmem>>, %arg2: memref<16x128xbf16, #tpu.memory_space<vmem>>, %arg3: memref<16x128xbf16, #tpu.memory_space<vmem>>, %arg4: memref<1x128xf32, #tpu.memory_space<vmem>>, %arg5: memref<16x128xbf16, #tpu.memory_space<vmem>>, %arg6: memref<1x8x128xf32, #tpu.memory_space<vmem>>) attributes {dimension_semantics = [#tpu.dimension_semantics<parallel>], iteration_bounds = array<i64: 1>, scalar_prefetch = 0 : i64, scratch_operands = 0 : i64, tpu.core_type = #tpu.core_type<tc>, window_params = [{pipeline_mode = #tpu.pipeline_mode<synchronous>, transform_indices = @transform_0, window_bounds = array<i64: 1, 128>}, {transform_indices = @transform_1, window_bounds = array<i64: 16, 128>}, {transform_indices = @transform_2, window_bounds = array<i64: 16, 128>}, {pipeline_mode = #tpu.pipeline_mode<synchronous>, transform_indices = @transform_3, window_bounds = array<i64: 1, 128>}, {transform_indices = @transform_4, window_bounds = array<i64: 16, 128>}, {transform_indices = @transform_5, window_bounds = array<i64: 1, 8, 128>}]} {
    %c0 = arith.constant 0 : index
    %c0_0 = arith.constant 0 : index
    %0 = vector.load %arg2[%c0, %c0_0] : memref<16x128xbf16, #tpu.memory_space<vmem>>, vector<16x128xbf16>
    %1 = arith.extf %0 : vector<16x128xbf16> to vector<16x128xf32>
    %c0_1 = arith.constant 0 : index
    %c0_2 = arith.constant 0 : index
    %2 = vector.load %arg3[%c0_1, %c0_2] : memref<16x128xbf16, #tpu.memory_space<vmem>>, vector<16x128xbf16>
    %3 = arith.extf %2 : vector<16x128xbf16> to vector<16x128xf32>
    %c0_3 = arith.constant 0 : index
    %c0_4 = arith.constant 0 : index
    %4 = vector.load %arg4[%c0_3, %c0_4] : memref<1x128xf32, #tpu.memory_space<vmem>>, vector<1x128xf32>
    %5 = vector.broadcast %4 : vector<1x128xf32> to vector<16x128xf32>
    %6 = arith.mulf %3, %5 : vector<16x128xf32>
    %7 = arith.subf %1, %6 : vector<16x128xf32>
    %8 = arith.truncf %7 : vector<16x128xf32> to vector<16x128xbf16>
    %c0_5 = arith.constant 0 : index
    %c0_6 = arith.constant 0 : index
    %9 = vector.load %arg5[%c0_5, %c0_6] : memref<16x128xbf16, #tpu.memory_space<vmem>>, vector<16x128xbf16>
    tpu.vector_store %arg5[%c0_5, %c0_6], %8 {strides = array<i32>} : memref<16x128xbf16, #tpu.memory_space<vmem>>, vector<16x128xbf16>,
    %c0_7 = arith.constant 0 : index
    %c0_8 = arith.constant 0 : index
    %10 = vector.load %arg1[%c0_7, %c0_8] : memref<1x128xf32, #tpu.memory_space<vmem>>, vector<1x128xf32>
    %11 = vector.broadcast %10 : vector<1x128xf32> to vector<16x128xf32>
    %12 = arith.subf %7, %11 : vector<16x128xf32>
    %13 = vector.shape_cast %7 : vector<16x128xf32> to vector<1x16x128xf32>
    %cst = arith.constant dense<0.000000e+00> : vector<1xf32>
    %14 = vector.multi_reduction <add>, %13, %cst [1, 2] : vector<1x16x128xf32> to vector<1xf32>
    %15 = vector.shape_cast %14 : vector<1xf32> to vector<1x1x1xf32>
    %16 = vector.extract %15[0, 0, 0] : f32 from vector<1x1x1xf32>
    %17 = arith.mulf %12, %12 : vector<16x128xf32>
    %18 = vector.shape_cast %17 : vector<16x128xf32> to vector<1x16x128xf32>
    %cst_9 = arith.constant dense<0.000000e+00> : vector<1xf32>
    %19 = vector.multi_reduction <add>, %18, %cst_9 [1, 2] : vector<1x16x128xf32> to vector<1xf32>
    %20 = vector.shape_cast %19 : vector<1xf32> to vector<1x1x1xf32>
    %21 = vector.extract %20[0, 0, 0] : f32 from vector<1x1x1xf32>
    %22 = tpu.iota {dimensions = array<i32: 0>} : vector<8x128xi32>
    %c0_i32 = arith.constant 0 : i32
    %23 = vector.broadcast %c0_i32 : i32 to vector<8x128xi32>
    %24 = arith.cmpi eq, %22, %23 : vector<8x128xi32>
    %c1_i32 = arith.constant 1 : i32
    %25 = vector.broadcast %c1_i32 : i32 to vector<8x128xi32>
    %26 = arith.cmpi eq, %22, %25 : vector<8x128xi32>
    %cst_10 = arith.constant 0.000000e+00 : f32
    %27 = vector.broadcast %21 : f32 to vector<8x128xf32>
    %28 = vector.broadcast %cst_10 : f32 to vector<8x128xf32>
    %29 = arith.select %26, %27, %28 : vector<8x128xi1>, vector<8x128xf32>
    %30 = vector.broadcast %16 : f32 to vector<8x128xf32>
    %31 = arith.select %24, %30, %29 : vector<8x128xi1>, vector<8x128xf32>
    %32 = vector.shape_cast %31 : vector<8x128xf32> to vector<1x8x128xf32>
    %c0_11 = arith.constant 0 : index
    %c0_12 = arith.constant 0 : index
    %c0_13 = arith.constant 0 : index
    %33 = vector.load %arg6[%c0_11, %c0_12, %c0_13] : memref<1x8x128xf32, #tpu.memory_space<vmem>>, vector<1x8x128xf32>
    tpu.vector_store %arg6[%c0_11, %c0_12, %c0_13], %32 {strides = array<i32>} : memref<1x8x128xf32, #tpu.memory_space<vmem>>, vector<1x8x128xf32>,
    return
  }
  func.func @transform_0(%arg0: i32) -> (i32, i32) {
    %c0_i32 = arith.constant 0 : i32
    %c0_i32_0 = arith.constant 0 : i32
    %c0_i32_1 = arith.constant 0 : i32
    return %c0_i32, %c0_i32_0 : i32, i32
  }
  func.func @transform_1(%arg0: i32) -> (i32, i32) {
    %c0_i32 = arith.constant 0 : i32
    %c0_i32_0 = arith.constant 0 : i32
    return %arg0, %c0_i32 : i32, i32
  }
  func.func @transform_2(%arg0: i32) -> (i32, i32) {
    %c0_i32 = arith.constant 0 : i32
    %c0_i32_0 = arith.constant 0 : i32
    return %arg0, %c0_i32 : i32, i32
  }
  func.func @transform_3(%arg0: i32) -> (i32, i32) {
    %c0_i32 = arith.constant 0 : i32
    %c0_i32_0 = arith.constant 0 : i32
    %c0_i32_1 = arith.constant 0 : i32
    return %c0_i32, %c0_i32_0 : i32, i32
  }
  func.func @transform_4(%arg0: i32) -> (i32, i32) {
    %c0_i32 = arith.constant 0 : i32
    %c0_i32_0 = arith.constant 0 : i32
    return %arg0, %c0_i32 : i32, i32
  }
  func.func @transform_5(%arg0: i32) -> (i32, i32, i32) {
    %c0_i32 = arith.constant 0 : i32
    %c0_i32_0 = arith.constant 0 : i32
    %c0_i32_1 = arith.constant 0 : i32
    return %arg0, %c0_i32, %c0_i32_0 : i32, i32, i32
  }
}

module attributes {stable_mosaic.version = 11 : i64} {
  func.func @_arima_kernel(%arg0: i32, %arg1: i32, %arg2: memref<1x1xf32, #tpu.memory_space<smem>>, %arg3: memref<16x128xbf16, #tpu.memory_space<vmem>>, %arg4: memref<1x128x256xbf16, #tpu.memory_space<vmem>>, %arg5: memref<1x128xf32, #tpu.memory_space<vmem>>, %arg6: memref<16x128xf32, #tpu.memory_space<vmem>>) attributes {dimension_semantics = [#tpu.dimension_semantics<parallel>, #tpu.dimension_semantics<parallel>], iteration_bounds = array<i64: 1, 1>, scalar_prefetch = 0 : i64, scratch_operands = 0 : i64, tpu.core_type = #tpu.core_type<tc>, window_params = [{transform_indices = @transform_0, window_bounds = array<i64: 1, 1>}, {transform_indices = @transform_1, window_bounds = array<i64: 16, 128>}, {transform_indices = @transform_2, window_bounds = array<i64: 1, 128, 256>}, {transform_indices = @transform_3, window_bounds = array<i64: 1, 128>}, {transform_indices = @transform_4, window_bounds = array<i64: 16, 128>}]} {
    %c0 = arith.constant 0 : index
    %c0_0 = arith.constant 0 : index
    %0 = vector.load %arg3[%c0, %c0_0] : memref<16x128xbf16, #tpu.memory_space<vmem>>, vector<16x128xbf16>
    %c0_1 = arith.constant 0 : index
    %c0_2 = arith.constant 0 : index
    %c0_3 = arith.constant 0 : index
    %1 = vector.load %arg4[%c0_1, %c0_2, %c0_3] : memref<1x128x256xbf16, #tpu.memory_space<vmem>>, vector<1x128x256xbf16>
    %2 = vector.shape_cast %1 : vector<1x128x256xbf16> to vector<128x256xbf16>
    %cst = arith.constant dense<0.000000e+00> : vector<16x256xf32>
    %3 = tpu.matmul %0, %2, %cst {dimension_numbers = #tpu.dot_dimension_numbers<[1], [0], [0], [1], [0, 0, 1, 1], [], []>} : vector<16x128xbf16>, vector<128x256xbf16>, vector<16x256xf32> -> vector<16x256xf32>
    %c0_4 = arith.constant 0 : index
    %c0_5 = arith.constant 0 : index
    %4 = memref.load %arg2[%c0_4, %c0_5] : memref<1x1xf32, #tpu.memory_space<smem>>
    %5 = vector.extract_strided_slice %3 {offsets = [0, 0], sizes = [16, 128], strides = [1, 1]} : vector<16x256xf32> to vector<16x128xf32>
    %6 = vector.extract_strided_slice %3 {offsets = [0, 128], sizes = [16, 128], strides = [1, 1]} : vector<16x256xf32> to vector<16x128xf32>
    %7 = vector.broadcast %4 : f32 to vector<16x128xf32>
    %8 = arith.mulf %6, %7 : vector<16x128xf32>
    %9 = arith.addf %5, %8 : vector<16x128xf32>
    %c0_6 = arith.constant 0 : index
    %c0_7 = arith.constant 0 : index
    %10 = vector.load %arg5[%c0_6, %c0_7] : memref<1x128xf32, #tpu.memory_space<vmem>>, vector<1x128xf32>
    %11 = vector.broadcast %10 : vector<1x128xf32> to vector<16x128xf32>
    %12 = arith.addf %9, %11 : vector<16x128xf32>
    %c0_8 = arith.constant 0 : index
    %c0_9 = arith.constant 0 : index
    %13 = vector.load %arg6[%c0_8, %c0_9] : memref<16x128xf32, #tpu.memory_space<vmem>>, vector<16x128xf32>
    tpu.vector_store %arg6[%c0_8, %c0_9], %12 {strides = array<i32>} : memref<16x128xf32, #tpu.memory_space<vmem>>, vector<16x128xf32>,
    return
  }
  func.func @transform_0(%arg0: i32, %arg1: i32) -> (i32, i32) {
    %c0_i32 = arith.constant 0 : i32
    %c0_i32_0 = arith.constant 0 : i32
    %c0_i32_1 = arith.constant 0 : i32
    return %c0_i32, %c0_i32_0 : i32, i32
  }
  func.func @transform_1(%arg0: i32, %arg1: i32) -> (i32, i32) {
    %c0_i32 = arith.constant 0 : i32
    %c0_i32_0 = arith.constant 0 : i32
    return %arg1, %c0_i32 : i32, i32
  }
  func.func @transform_2(%arg0: i32, %arg1: i32) -> (i32, i32, i32) {
    %c0_i32 = arith.constant 0 : i32
    %c0_i32_0 = arith.constant 0 : i32
    %c0_i32_1 = arith.constant 0 : i32
    return %arg0, %c0_i32, %c0_i32_0 : i32, i32, i32
  }
  func.func @transform_3(%arg0: i32, %arg1: i32) -> (i32, i32) {
    %c0_i32 = arith.constant 0 : i32
    %c0_i32_0 = arith.constant 0 : i32
    return %c0_i32, %arg0 : i32, i32
  }
  func.func @transform_4(%arg0: i32, %arg1: i32) -> (i32, i32) {
    %c0_i32 = arith.constant 0 : i32
    return %arg1, %arg0 : i32, i32
  }
}

</mosaic_0001>

<llo_original>
// kernel: mul.22.clone
$region0: #{mul.22.clone}
  #allocation0 [shape = 's32[1]{0}', space=sflag, size = 0x4, scoped, tag = 'scoped memory for mul.22.clone']
  %s0 = inlined_call_operand.vmem [shape: f32[4], index: 0, kind: input, shape index: {}]
  %s1 = inlined_call_operand.vmem [shape: f32[7,4], index: 1, kind: output, shape index: {}]
  // Predicated region
  $region2: #{mul.22.clone} parent=0 // pred_check
    _
  $region3: #{mul.22.clone} parent=0 // pred_check_branch
    %3 = sbr.rel (0) target = $region5
  $region4: #{mul.22.clone} parent=0 // pred_region
    _
  $region5: #{mul.22.clone} parent=0 // pred_fallthru
    _
  %v4 = vld [vmem:[%s0] ss:$0 sm:$0xff]
  %5 = vst [vmem:[%s1] sm:$0xff] %v4

// kernel: tile.9
$region0: #{tile.9}
  %s0 = inlined_call_operand.vmem [shape: f32[7,4], index: 0, kind: input, shape index: {}]
  %s1 = inlined_call_operand.vmem [shape: f32[28], index: 1, kind: output, shape index: {}]
  $region1: #{tile.9} parent=0
    #allocation0 [shape = 'u8[4096]{0}', space=vmem, size = 0x1000, scoped, tag = 'scoped mem for output reshape']
    %v2 = vld [vmem:[%s0] sm:$0x1]
    %vm3 = vcmask 31744
    %4 = vst.msk [vmem:[#allocation0] sm:$0x1] %vm3, %v2
    %s5 = scalar_lea.vmem %s0, 6
    %v6 = vld [vmem:[%s5] sm:$0x1]
    %7 = vrot.lane.b32.xlu0 %v6, 24
    %v8 = vpop.permute.xlu0 %7
    %vm9 = vcmask 228544
    %10 = vst.msk [vmem:[#allocation0] sm:$0x1] %vm9, %v8
    %s11 = scalar_lea.vmem %s0, 5
    %v12 = vld [vmem:[%s11] sm:$0x1]
    %13 = vrot.lane.b32.xlu0 %v12, 20
    %v14 = vpop.permute.xlu0 %13
    %vm15 = vcmask 195744
    %16 = vst.msk [vmem:[#allocation0] sm:$0x1] %vm15, %v14
    %s17 = scalar_lea.vmem %s0, 4
    %v18 = vld [vmem:[%s17] sm:$0x1]
    %19 = vrot.lane.b32.xlu0 %v18, 16
    %v20 = vpop.permute.xlu0 %19
    %vm21 = vcmask 162944
    %22 = vst.msk [vmem:[#allocation0] sm:$0x1] %vm21, %v20
    %s23 = scalar_lea.vmem %s0, 3
    %v24 = vld [vmem:[%s23] sm:$0x1]
    %25 = vrot.lane.b32.xlu0 %v24, 12
    %v26 = vpop.permute.xlu0 %25
    %vm27 = vcmask 130144
    %28 = vst.msk [vmem:[#allocation0] sm:$0x1] %vm27, %v26
    %s29 = scalar_lea.vmem %s0, 2
    %v30 = vld [vmem:[%s29] sm:$0x1]
    %31 = vrot.lane.b32.xlu0 %v30, 8
    %v32 = vpop.permute.xlu0 %31
    %vm33 = vcmask 97344
    %34 = vst.msk [vmem:[#allocation0] sm:$0x1] %vm33, %v32
    %s35 = scalar_lea.vmem %s0, 1
    %v36 = vld [vmem:[%s35] sm:$0x1]
    %37 = vrot.lane.b32.xlu0 %v36, 4
    %v38 = vpop.permute.xlu0 %37
    %vm39 = vcmask 64544
    %40 = vst.msk [vmem:[#allocation0] sm:$0x1] %vm39, %v38
    %s42 = sshllo.u32 0, 1
    %v44 = vld [vmem:[#allocation0] sm:%s42]
    %s45 = sshllo.u32 0, 1
    %46 = vst [vmem:[%s1] sm:%s45] %v44

// kernel: arima_forward.2
$region0: #{arima_forward.2}
  #allocation0 [shape = 'u32[]', space=smem, size = 0x4, offset = 0x4, fixed_abs, tag = 'smem constant byte address 0x4 - core index']
  #allocation1 [shape = 'u32[144,128]{1,0:T(1,128)}', space=vmem, size = 0x12000, scoped, tag = 'internal scratch']
  %s0 = inlined_call_operand.vmem [shape: f32[1,128], index: 0, kind: input, shape index: {}]
  %s1 = inlined_call_operand.vmem [shape: bf16[16,128], index: 1, kind: input, shape index: {}]
  %s2 = inlined_call_operand.vmem [shape: bf16[16,128], index: 2, kind: input, shape index: {}]
  %s3 = inlined_call_operand.vmem [shape: f32[1,128], index: 3, kind: input, shape index: {}]
  %s4 = inlined_call_operand.vmem [shape: bf16[16,128], index: 4, kind: output, shape index: {0}]
  %s5 = inlined_call_operand.vmem [shape: f32[1,8,128], index: 5, kind: output, shape index: {1}]
  %6 = xla_tuple %s4, %s5
  %s7 = sld [smem:[#allocation0]]
  $region34: #{arima_forward.2} parent=0
    _
  %s9 = ssub.s32 1, %s7
  %s10 = scalar_select 0, %s9, %s7
  // Predicated region
  $region2: #{arima_forward.2} parent=0 // pred_check
    _
  $region3: #{arima_forward.2} parent=0 // pred_check_branch
    %12 = sbr.rel (0) target = $region5
  $region4: #{arima_forward.2} parent=0 // pred_region
    _
  $region5: #{arima_forward.2} parent=0 // pred_fallthru
    _
  // Predicated region
  $region6: #{arima_forward.2} parent=0 // pred_check
    _
  $region7: #{arima_forward.2} parent=0 // pred_check_branch
    %14 = sbr.rel (0) target = $region9
  $region8: #{arima_forward.2} parent=0 // pred_region
    _
  $region9: #{arima_forward.2} parent=0 // pred_fallthru
    _
  // Predicated region
  $region10: #{arima_forward.2} parent=0 // pred_check
    _
  $region11: #{arima_forward.2} parent=0 // pred_check_branch
    %16 = sbr.rel (0) target = $region13
  $region12: #{arima_forward.2} parent=0 // pred_region
    _
  $region13: #{arima_forward.2} parent=0 // pred_fallthru
    _
  // Predicated region
  $region14: #{arima_forward.2} parent=0 // pred_check
    _
  $region15: #{arima_forward.2} parent=0 // pred_check_branch
    %18 = sbr.rel (0) target = $region17
  $region16: #{arima_forward.2} parent=0 // pred_region
    _
  $region17: #{arima_forward.2} parent=0 // pred_fallthru
    _
  %v19 = vld [vmem:[%s1] sm:$0xf]
  %v20 = vld [vmem:[%s1 + $0x4] sm:$0xf]
  %v21 = vunpack.c.l.bf16 %v19
  %v22 = vunpack.c.l.bf16 %v20
  %v23 = vld [vmem:[%s2] sm:$0xf]
  %v24 = vld [vmem:[%s2 + $0x4] sm:$0xf]
  %v25 = vunpack.c.l.bf16 %v23
  %v26 = vunpack.c.l.bf16 %v24
  %v27 = vld [vmem:[%s3] sm:$0x1]
  %v29 = vlaneseq
  %v30 = vshrl.u32 %v29, 7
  %v31 = vsub.s32 0, %v30
  %v32 = vrot.slane %v27, %v31
  %v34 = vmul.f32 %v25, %v32
  %v35 = vmul.f32 %v26, %v32
  %v36 = vsub.f32 %v21, %v34
  %v37 = vsub.f32 %v22, %v35
  %v38 = vpack.c.bf16 %v37, %v36
  %v40 = vunpack.c.l.b16 %v38
  %v41 = vunpack.c.h.b16 %v38
  %v42 = vpack.c.b16 %v40, %v40
  %v43 = vpack.c.b16 %v41, %v41
  %46 = vst [vmem:[%s4] sm:$0xf] %v42
  %47 = vst [vmem:[%s4 + $0x4] sm:$0xf] %v43
  %v48 = vld [vmem:[%s0] sm:$0x1]
  %v50 = vlaneseq
  %v51 = vshrl.u32 %v50, 7
  %v52 = vsub.s32 0, %v51
  %v53 = vrot.slane %v48, %v52
  %v55 = vsub.f32 %v36, %v53
  %v56 = vsub.f32 %v37, %v53
  %v57 = vadd.f32 %v36, %v37
  %58 = vadd.xlane.f32.xlu0 %v57
  %v59 = vpop.xlane.xlu0 %58
  %v60 = vrot.slane %v59, 4
  %v61 = vadd.f32 %v59, %v60
  %v62 = vrot.slane %v61, 2
  %v63 = vadd.f32 %v61, %v62
  %v64 = vrot.slane %v63, 1
  %v65 = vadd.f32 %v63, %v64
  %s66 = vtos %v65
  %v67 = vmul.f32 %v55, %v55
  %v68 = vmul.f32 %v56, %v56
  %v69 = vadd.f32 %v67, %v68
  %70 = vadd.xlane.f32.xlu0 %v69
  %v71 = vpop.xlane.xlu0 %70
  %v72 = vrot.slane %v71, 4
  %v73 = vadd.f32 %v71, %v72
  %v74 = vrot.slane %v73, 2
  %v75 = vadd.f32 %v73, %v74
  %v76 = vrot.slane %v75, 1
  %v77 = vadd.f32 %v75, %v76
  %s78 = vtos %v77
  %v79 = vlaneseq
  %v80 = vshrl.u32 %v79, 7
  %vm81 = vcmp.eq.s32.totalorder %v80, 0
  %vm82 = vcmp.eq.s32.totalorder %v80, 1
  %v83 = vstv %s78
  %v84 = vsel %vm82, %v83, 0.0
  %v85 = vstv %s66
  %v86 = vsel %vm81, %v85, %v84
  %87 = vst [vmem:[%s5] sm:$0xff] %v86
  // Predicated region
  $region18: #{arima_forward.2} parent=0 // pred_check
    _
  $region19: #{arima_forward.2} parent=0 // pred_check_branch
    %89 = sbr.rel (0) target = $region21
  $region20: #{arima_forward.2} parent=0 // pred_region
    _
  $region21: #{arima_forward.2} parent=0 // pred_fallthru
    _
  // Predicated region
  $region22: #{arima_forward.2} parent=0 // pred_check
    _
  $region23: #{arima_forward.2} parent=0 // pred_check_branch
    %91 = sbr.rel (0) target = $region25
  $region24: #{arima_forward.2} parent=0 // pred_region
    _
  $region25: #{arima_forward.2} parent=0 // pred_fallthru
    _
  // Predicated region
  $region26: #{arima_forward.2} parent=0 // pred_check
    _
  $region27: #{arima_forward.2} parent=0 // pred_check_branch
    %93 = sbr.rel (0) target = $region29
  $region28: #{arima_forward.2} parent=0 // pred_region
    _
  $region29: #{arima_forward.2} parent=0 // pred_fallthru
    _
  // Predicated region
  $region30: #{arima_forward.2} parent=0 // pred_check
    _
  $region31: #{arima_forward.2} parent=0 // pred_check_branch
    %95 = sbr.rel (0) target = $region33
  $region32: #{arima_forward.2} parent=0 // pred_region
    _
  $region33: #{arima_forward.2} parent=0 // pred_fallthru
    _

// kernel: arima_forward.3
$region0: #{arima_forward.3}
  #allocation0 [shape = 'u32[]', space=smem, size = 0x4, offset = 0x4, fixed_abs, tag = 'smem constant byte address 0x4 - core index']
  #allocation1 [shape = 'u32[144,128]{1,0:T(1,128)}', space=vmem, size = 0x12000, scoped, tag = 'internal scratch']
  #allocation2 [shape = 'f32[1,1]{1,0:T(1,128)S(6)}', space=smem, size = 0x200, scoped, tag = 'scoped memory for arima_forward.3']
  %s0 = inlined_call_operand.<no memory space> [shape: f32[1,1], index: 0, kind: input, shape index: {}]
  %s1 = inlined_call_operand.vmem [shape: bf16[16,128], index: 1, kind: input, shape index: {}]
  %s2 = inlined_call_operand.vmem [shape: bf16[1,128,256], index: 2, kind: input, shape index: {}]
  %s3 = inlined_call_operand.vmem [shape: f32[1,128], index: 3, kind: input, shape index: {}]
  %s4 = inlined_call_operand.vmem [shape: f32[16,128], index: 4, kind: output, shape index: {}]
  %s5 = sld [smem:[#allocation0]]
  $region26: #{arima_forward.3} parent=0
    _
  %s7 = ssub.s32 1, %s5
  %s8 = scalar_select 0, %s7, %s5
  %9 = sst [smem:[#allocation2]] %s0
  // Predicated region
  $region2: #{arima_forward.3} parent=0 // pred_check
    _
  $region3: #{arima_forward.3} parent=0 // pred_check_branch
    %11 = sbr.rel (0) target = $region5
  $region4: #{arima_forward.3} parent=0 // pred_region
    _
  $region5: #{arima_forward.3} parent=0 // pred_fallthru
    _
  // Predicated region
  $region6: #{arima_forward.3} parent=0 // pred_check
    _
  $region7: #{arima_forward.3} parent=0 // pred_check_branch
    %13 = sbr.rel (0) target = $region9
  $region8: #{arima_forward.3} parent=0 // pred_region
    _
  $region9: #{arima_forward.3} parent=0 // pred_fallthru
    _
  // Predicated region
  $region10: #{arima_forward.3} parent=0 // pred_check
    _
  $region11: #{arima_forward.3} parent=0 // pred_check_branch
    %15 = sbr.rel (0) target = $region13
  $region12: #{arima_forward.3} parent=0 // pred_region
    _
  $region13: #{arima_forward.3} parent=0 // pred_fallthru
    _
  // Predicated region
  $region14: #{arima_forward.3} parent=0 // pred_check
    _
  $region15: #{arima_forward.3} parent=0 // pred_check_branch
    %17 = sbr.rel (0) target = $region17
  $region16: #{arima_forward.3} parent=0 // pred_region
    _
  $region17: #{arima_forward.3} parent=0 // pred_fallthru
    _
  %v19 = vld [vmem:[%s1] sm:$0xf]
  %v20 = vld [vmem:[%s1 + $0x4] sm:$0xf]
  %v21 = vld [vmem:[%s2] sm:$0xff]
  %v22 = vld [vmem:[%s2 + $0x8] sm:$0xff]
  %v23 = vld [vmem:[%s2 + $0x10] sm:$0xff]
  %v24 = vld [vmem:[%s2 + $0x18] sm:$0xff]
  %v25 = vld [vmem:[%s2 + $0x20] sm:$0xff]
  %v26 = vld [vmem:[%s2 + $0x28] sm:$0xff]
  %v27 = vld [vmem:[%s2 + $0x30] sm:$0xff]
  %v28 = vld [vmem:[%s2 + $0x38] sm:$0xff]
  %v29 = vld [vmem:[%s2 + $0x40] sm:$0xff]
  %v30 = vld [vmem:[%s2 + $0x48] sm:$0xff]
  %v31 = vld [vmem:[%s2 + $0x50] sm:$0xff]
  %v32 = vld [vmem:[%s2 + $0x58] sm:$0xff]
  %v33 = vld [vmem:[%s2 + $0x60] sm:$0xff]
  %v34 = vld [vmem:[%s2 + $0x68] sm:$0xff]
  %v35 = vld [vmem:[%s2 + $0x70] sm:$0xff]
  %v36 = vld [vmem:[%s2 + $0x78] sm:$0xff]
  %v39 = vunpack.c.l.b16 %v19
  %v40 = vunpack.c.l.b16 %v20
  %v41 = vpack.c.b16 %v40, %v39
  %v59 = vunpack.c.l.b16 %v21
  %v60 = vunpack.c.h.b16 %v21
  %v61 = vunpack.c.l.b16 %v22
  %v62 = vunpack.c.h.b16 %v22
  %v63 = vunpack.c.l.b16 %v23
  %v64 = vunpack.c.h.b16 %v23
  %v65 = vunpack.c.l.b16 %v24
  %v66 = vunpack.c.h.b16 %v24
  %v67 = vunpack.c.l.b16 %v25
  %v68 = vunpack.c.h.b16 %v25
  %v69 = vunpack.c.l.b16 %v26
  %v70 = vunpack.c.h.b16 %v26
  %v71 = vunpack.c.l.b16 %v27
  %v72 = vunpack.c.h.b16 %v27
  %v73 = vunpack.c.l.b16 %v28
  %v74 = vunpack.c.h.b16 %v28
  %v75 = vunpack.c.l.b16 %v29
  %v76 = vunpack.c.h.b16 %v29
  %v77 = vunpack.c.l.b16 %v30
  %v78 = vunpack.c.h.b16 %v30
  %v79 = vunpack.c.l.b16 %v31
  %v80 = vunpack.c.h.b16 %v31
  %v81 = vunpack.c.l.b16 %v32
  %v82 = vunpack.c.h.b16 %v32
  %v83 = vunpack.c.l.b16 %v33
  %v84 = vunpack.c.h.b16 %v33
  %v85 = vunpack.c.l.b16 %v34
  %v86 = vunpack.c.h.b16 %v34
  %v87 = vunpack.c.l.b16 %v35
  %v88 = vunpack.c.h.b16 %v35
  %v89 = vunpack.c.l.b16 %v36
  %v90 = vunpack.c.h.b16 %v36
  %v91 = vpack.c.b16 %v61, %v59
  %v92 = vpack.c.b16 %v62, %v60
  %v93 = vpack.c.b16 %v65, %v63
  %v94 = vpack.c.b16 %v66, %v64
  %v95 = vpack.c.b16 %v69, %v67
  %v96 = vpack.c.b16 %v70, %v68
  %v97 = vpack.c.b16 %v73, %v71
  %v98 = vpack.c.b16 %v74, %v72
  %v99 = vpack.c.b16 %v77, %v75
  %v100 = vpack.c.b16 %v78, %v76
  %v101 = vpack.c.b16 %v81, %v79
  %v102 = vpack.c.b16 %v82, %v80
  %v103 = vpack.c.b16 %v85, %v83
  %v104 = vpack.c.b16 %v86, %v84
  %v105 = vpack.c.b16 %v89, %v87
  %v106 = vpack.c.b16 %v90, %v88
  %123 = vmatprep.subr.bf16.mxu0 %v92
  %124 = vmatpush1.bf16.msra.mxu0 %v91
  %125 = vmatprep.subr.bf16.mxu0 %v94
  %126 = vmatpush1.bf16.msra.mxu0 %v93
  %127 = vmatprep.subr.bf16.mxu0 %v96
  %128 = vmatpush1.bf16.msra.mxu0 %v95
  %129 = vmatprep.subr.bf16.mxu0 %v98
  %130 = vmatpush1.bf16.msra.mxu0 %v97
  %131 = vmatprep.subr.bf16.mxu0 %v100
  %132 = vmatpush1.bf16.msra.mxu0 %v99
  %133 = vmatprep.subr.bf16.mxu0 %v102
  %134 = vmatpush1.bf16.msra.mxu0 %v101
  %135 = vmatprep.subr.bf16.mxu0 %v104
  %136 = vmatpush1.bf16.msra.mxu0 %v103
  %137 = vmatprep.subr.bf16.mxu0 %v106
  %138 = vmatpush1.bf16.msra.mxu0 %v105
  %139 = vmatprep.subr.bf16.mxu0 0
  %140 = vmatpush1.bf16.msra.mxu0 0
  %141 = vmatprep.subr.bf16.mxu0 0
  %142 = vmatpush1.bf16.msra.mxu0 0
  %143 = vmatprep.subr.bf16.mxu0 0
  %144 = vmatpush1.bf16.msra.mxu0 0
  %145 = vmatprep.subr.bf16.mxu0 0
  %146 = vmatpush1.bf16.msra.mxu0 0
  %147 = vmatprep.subr.bf16.mxu0 0
  %148 = vmatpush1.bf16.msra.mxu0 0
  %149 = vmatprep.subr.bf16.mxu0 0
  %150 = vmatpush1.bf16.msra.mxu0 0
  %151 = vmatprep.subr.bf16.mxu0 0
  %152 = vmatpush1.bf16.msra.mxu0 0
  %153 = vmatprep.subr.bf16.mxu0 0
  %154 = vmatpush1.bf16.msra.mxu0 0
  %155 = vmatprep.mubr.bf16.mxu0 0
  %156 = vmatmul.mubr.bf16.gmra.mrb[0].mxu0 %v41
  %v157 = vpop.f32.mrb[0].mxu0
  %v158 = vadd.f32 0.0, %v157
  %v159 = vpop.f32.mrb[0].mxu0
  %v160 = vadd.f32 0.0, %v159
  %v161 = vpop.f32.mrb[0].mxu0
  %v162 = vadd.f32 0.0, %v161
  %v163 = vpop.f32.mrb[0].mxu0
  %v164 = vadd.f32 0.0, %v163
  %165 = vdwg.mxu0
  %s166 = sld [smem:[#allocation2]]
  %v167 = vstv %s166
  %v168 = vmul.f32 %v160, %v167
  %v169 = vmul.f32 %v164, %v167
  %v170 = vadd.f32 %v158, %v168
  %v171 = vadd.f32 %v162, %v169
  %v172 = vld [vmem:[%s3] sm:$0x1]
  %v174 = vlaneseq
  %v175 = vshrl.u32 %v174, 7
  %v176 = vsub.s32 0, %v175
  %v177 = vrot.slane %v172, %v176
  %v179 = vadd.f32 %v170, %v177
  %v180 = vadd.f32 %v171, %v177
  %181 = vst [vmem:[%s4] sm:$0xff] %v179
  %182 = vst [vmem:[%s4 + $0x8] sm:$0xff] %v180
  // Predicated region
  $region18: #{arima_forward.3} parent=0 // pred_check
    _
  $region19: #{arima_forward.3} parent=0 // pred_check_branch
    %184 = sbr.rel (0) target = $region21
  $region20: #{arima_forward.3} parent=0 // pred_region
    _
  $region21: #{arima_forward.3} parent=0 // pred_fallthru
    _
  // Predicated region
  $region22: #{arima_forward.3} parent=0 // pred_check
    _
  $region23: #{arima_forward.3} parent=0 // pred_check_branch
    %186 = sbr.rel (0) target = $region25
  $region24: #{arima_forward.3} parent=0 // pred_region
    _
  $region25: #{arima_forward.3} parent=0 // pred_fallthru
    _

</llo_original>
